<compile_context>
chip_gen: v6e
topology: v6e:2x2x1
jax: 0.10.0
libtpu: 0.0.40
codegen_flags: <defaults>
</compile_context>

<pallas_src>
import functools

import jax
import jax.numpy as jnp
from jax.experimental import pallas as pl
from jax.experimental.pallas import tpu as pltpu


def _round_up(x, m):
    return ((x + m - 1) // m) * m


def actor_kernel(x_ref, w_ref, b_ref, o_ref, *, k_dims, n_layers):
    # Layer 0: the x block width already equals the true contraction size.
    h = x_ref[...].astype(w_ref.dtype)                           # (tm, d_in) bf16
    for layer in range(n_layers):
        k = k_dims[layer]
        lhs = h if layer == 0 else h[:, :k]                      # static lane slice
        acc = jnp.dot(lhs, w_ref[layer, :k, :],                  # true-K MXU dot
                      preferred_element_type=jnp.float32)
        acc = acc + b_ref[layer:layer + 1, :]                    # f32 bias add
        if layer < n_layers - 1:
            # relu then downcast == bf16 relu; keeps h narrow between layers.
            h = jnp.maximum(acc, 0.0).astype(w_ref.dtype)
        else:
            o_ref[...] = jnp.tanh(acc)                           # lane-dense store


@functools.partial(jax.jit, static_argnames=("k_dims", "n_out"))
def actor_forward(x, w_pack, b_pack, *, k_dims, n_out):
    B, d_in = x.shape
    n_layers, P, _ = w_pack.shape

    # Batch tile: multiple of 8 always; >= 2 tiles once B >= 16 so both v7x
    # TensorCores get work; cap at 512 rows per tile.
    if B < 16:
        tm = _round_up(max(B, 1), 8)
    else:
        tm = min(512, _round_up(-(-B // 2), 8))
    Bp = _round_up(B, tm)
    xp = x if Bp == B else jnp.pad(x, ((0, Bp - B), (0, 0)))

    kernel = functools.partial(actor_kernel, k_dims=k_dims, n_layers=n_layers)

    out = pl.pallas_call(
        kernel,
        out_shape=jax.ShapeDtypeStruct((Bp, P), jnp.float32),   # lane-dense output
        grid_spec=pltpu.PrefetchScalarGridSpec(
            num_scalar_prefetch=0,
            grid=(Bp // tm,),
            in_specs=[
                pl.BlockSpec((tm, d_in), lambda i: (i, 0)),           # activations stream
                pl.BlockSpec((n_layers, P, P), lambda i: (0, 0, 0)),  # weights resident
                pl.BlockSpec((n_layers, P), lambda i: (0, 0)),        # biases resident
            ],
            out_specs=pl.BlockSpec((tm, P), lambda i: (i, 0)),
        ),
        compiler_params=pltpu.CompilerParams(
            dimension_semantics=("parallel",)),
    )(xp, w_pack, b_pack)

    return out[:B, :n_out]        # drop padded rows and zero-padded lanes


def pack_actor_params(params, *, mxu_dtype=jnp.bfloat16):
    """Pack PyTorch-style (out,in) weights + (out,) biases into zero-padded,
    lane-dense slabs (done once, not per forward). Also returns the static
    per-layer contraction sizes and the true output width."""
    dims = [(w.shape[1], w.shape[0]) for w, _ in params]        # (in, out) per layer
    max_dim = max(d for pair in dims for d in pair)
    P = _round_up(max_dim, 128)                                 # lane-dense pad
    n = len(params)
    w_pack = jnp.zeros((n, P, P), mxu_dtype)
    b_pack = jnp.zeros((n, P), jnp.float32)
    for i, (w, b) in enumerate(params):
        din, dout = dims[i]
        w_pack = w_pack.at[i, :din, :dout].set(w.T.astype(mxu_dtype))
        b_pack = b_pack.at[i, :dout].set(b.astype(jnp.float32))
    # Per-layer contraction sizes: layer 0 uses x's exact width; later layers
    # round up to 16 (bf16 sublane pack), capped at P.
    k_dims = (dims[0][0],) + tuple(min(P, _round_up(din, 16)) for din, _ in dims[1:])
    n_out = dims[-1][1]
    return w_pack, b_pack, k_dims, n_out


def init_linear(key, in_dim, out_dim):
    # PyTorch nn.Linear default init: U(-1/sqrt(in), 1/sqrt(in)) for W and b.
    kw, kb = jax.random.split(key)
    bound = 1.0 / jnp.sqrt(jnp.float32(in_dim))
    w = jax.random.uniform(kw, (out_dim, in_dim), jnp.float32, -bound, bound)
    b = jax.random.uniform(kb, (out_dim,), jnp.float32, -bound, bound)
    return w, b


def init_actor_params(key, input_dims, input_out, layer1_dims, layer2_dims,
                      layer3_dims, action_space):
    # layer3_dims is unused in the PyTorch module's layer chain.
    k1, k2, k3, k4, k4b = jax.random.split(key, 5)
    first = init_linear(k1, input_dims, input_out)
    second = init_linear(k2, input_out, layer1_dims)
    third = init_linear(k3, layer1_dims, layer2_dims)
    # last: weight ~ U(-0.003, 0.003), bias keeps default init (norm_const=1)
    w4 = jax.random.uniform(k4, (action_space, layer2_dims), jnp.float32,
                            -0.003, 0.003)
    bound4 = 1.0 / jnp.sqrt(jnp.float32(layer2_dims))
    b4 = jax.random.uniform(k4b, (action_space,), jnp.float32, -bound4, bound4)
    return (first, second, third, (w4, b4))


if __name__ == "__main__":
    key = jax.random.PRNGKey(0)
    k_params, k_x = jax.random.split(key)

    # Small shapes consistent with the module.
    batch = 8
    input_dims, input_out = 16, 32
    layer1_dims, layer2_dims, layer3_dims = 64, 32, 32
    action_space = 8

    params = init_actor_params(k_params, input_dims, input_out,
                               layer1_dims, layer2_dims, layer3_dims,
                               action_space)
    w_pack, b_pack, k_dims, n_out = pack_actor_params(params)   # one-time packing
    x = jax.random.normal(k_x, (batch, input_dims), jnp.float32)

    out = actor_forward(x, w_pack, b_pack, k_dims=k_dims, n_out=n_out)
    out = jax.block_until_ready(out)

    # Reference check in plain f32 JAX (kernel uses bf16 MXU operands and bf16
    # intermediates, so use a looser tolerance than the exact-f32 path).
    (w1, b1), (w2, b2), (w3, b3), (w4, b4) = params
    h = jnp.maximum(x @ w1.T + b1, 0.0)
    h = jnp.maximum(h @ w2.T + b2, 0.0)
    h = jnp.maximum(h @ w3.T + b3, 0.0)
    ref = jnp.tanh(h @ w4.T + b4)

    assert out.shape == (batch, action_space)
    assert jnp.allclose(out, ref, atol=2e-2), "mismatch vs reference"

    print("KERNEL_OK")
</pallas_src>

<mosaic_0001>
module attributes {stable_mosaic.version = 11 : i64} {
  func.func @actor_kernel(%arg0: i32, %arg1: memref<8x16xf32, #tpu.memory_space<vmem>>, %arg2: memref<4x128x128xbf16, #tpu.memory_space<vmem>>, %arg3: memref<4x128xf32, #tpu.memory_space<vmem>>, %arg4: memref<8x128xf32, #tpu.memory_space<vmem>>) attributes {dimension_semantics = [#tpu.dimension_semantics<parallel>], iteration_bounds = array<i64: 1>, scalar_prefetch = 0 : i64, scratch_operands = 0 : i64, tpu.core_type = #tpu.core_type<tc>, window_params = [{transform_indices = @transform_0, window_bounds = array<i64: 8, 16>}, {pipeline_mode = #tpu.pipeline_mode<synchronous>, transform_indices = @transform_1, window_bounds = array<i64: 4, 128, 128>}, {pipeline_mode = #tpu.pipeline_mode<synchronous>, transform_indices = @transform_2, window_bounds = array<i64: 4, 128>}, {transform_indices = @transform_3, window_bounds = array<i64: 8, 128>}]} {
    %c0 = arith.constant 0 : index
    %c0_0 = arith.constant 0 : index
    %0 = vector.load %arg1[%c0, %c0_0] : memref<8x16xf32, #tpu.memory_space<vmem>>, vector<8x16xf32>
    %1 = arith.truncf %0 : vector<8x16xf32> to vector<8x16xbf16>
    %c0_1 = arith.constant 0 : index
    %c0_2 = arith.constant 0 : index
    %c0_3 = arith.constant 0 : index
    %2 = vector.load %arg2[%c0_1, %c0_2, %c0_3] : memref<4x128x128xbf16, #tpu.memory_space<vmem>>, vector<1x16x128xbf16>
    %3 = vector.shape_cast %2 : vector<1x16x128xbf16> to vector<16x128xbf16>
    %cst = arith.constant dense<0.000000e+00> : vector<8x128xf32>
    %4 = tpu.matmul %1, %3, %cst {dimension_numbers = #tpu.dot_dimension_numbers<[1], [0], [0], [1], [0, 0, 1, 1], [], []>} : vector<8x16xbf16>, vector<16x128xbf16>, vector<8x128xf32> -> vector<8x128xf32>
    %c0_4 = arith.constant 0 : index
    %c0_5 = arith.constant 0 : index
    %5 = vector.load %arg3[%c0_4, %c0_5] : memref<4x128xf32, #tpu.memory_space<vmem>>, vector<1x128xf32>
    %6 = vector.broadcast %5 : vector<1x128xf32> to vector<8x128xf32>
    %7 = arith.addf %4, %6 : vector<8x128xf32>
    %cst_6 = arith.constant 0.000000e+00 : f32
    %8 = vector.broadcast %cst_6 : f32 to vector<8x128xf32>
    %9 = arith.maximumf %7, %8 : vector<8x128xf32>
    %10 = arith.truncf %9 : vector<8x128xf32> to vector<8x128xbf16>
    %11 = vector.extract_strided_slice %10 {offsets = [0, 0], sizes = [8, 32], strides = [1, 1]} : vector<8x128xbf16> to vector<8x32xbf16>
    %c1 = arith.constant 1 : index
    %c0_7 = arith.constant 0 : index
    %c0_8 = arith.constant 0 : index
    %12 = vector.load %arg2[%c1, %c0_7, %c0_8] : memref<4x128x128xbf16, #tpu.memory_space<vmem>>, vector<1x32x128xbf16>
    %13 = vector.shape_cast %12 : vector<1x32x128xbf16> to vector<32x128xbf16>
    %cst_9 = arith.constant dense<0.000000e+00> : vector<8x128xf32>
    %14 = tpu.matmul %11, %13, %cst_9 {dimension_numbers = #tpu.dot_dimension_numbers<[1], [0], [0], [1], [0, 0, 1, 1], [], []>} : vector<8x32xbf16>, vector<32x128xbf16>, vector<8x128xf32> -> vector<8x128xf32>
    %c1_10 = arith.constant 1 : index
    %c0_11 = arith.constant 0 : index
    %15 = vector.load %arg3[%c1_10, %c0_11] : memref<4x128xf32, #tpu.memory_space<vmem>>, vector<1x128xf32>
    %16 = vector.broadcast %15 : vector<1x128xf32> to vector<8x128xf32>
    %17 = arith.addf %14, %16 : vector<8x128xf32>
    %cst_12 = arith.constant 0.000000e+00 : f32
    %18 = vector.broadcast %cst_12 : f32 to vector<8x128xf32>
    %19 = arith.maximumf %17, %18 : vector<8x128xf32>
    %20 = arith.truncf %19 : vector<8x128xf32> to vector<8x128xbf16>
    %21 = vector.extract_strided_slice %20 {offsets = [0, 0], sizes = [8, 64], strides = [1, 1]} : vector<8x128xbf16> to vector<8x64xbf16>
    %c2 = arith.constant 2 : index
    %c0_13 = arith.constant 0 : index
    %c0_14 = arith.constant 0 : index
    %22 = vector.load %arg2[%c2, %c0_13, %c0_14] : memref<4x128x128xbf16, #tpu.memory_space<vmem>>, vector<1x64x128xbf16>
    %23 = vector.shape_cast %22 : vector<1x64x128xbf16> to vector<64x128xbf16>
    %cst_15 = arith.constant dense<0.000000e+00> : vector<8x128xf32>
    %24 = tpu.matmul %21, %23, %cst_15 {dimension_numbers = #tpu.dot_dimension_numbers<[1], [0], [0], [1], [0, 0, 1, 1], [], []>} : vector<8x64xbf16>, vector<64x128xbf16>, vector<8x128xf32> -> vector<8x128xf32>
    %c2_16 = arith.constant 2 : index
    %c0_17 = arith.constant 0 : index
    %25 = vector.load %arg3[%c2_16, %c0_17] : memref<4x128xf32, #tpu.memory_space<vmem>>, vector<1x128xf32>
    %26 = vector.broadcast %25 : vector<1x128xf32> to vector<8x128xf32>
    %27 = arith.addf %24, %26 : vector<8x128xf32>
    %cst_18 = arith.constant 0.000000e+00 : f32
    %28 = vector.broadcast %cst_18 : f32 to vector<8x128xf32>
    %29 = arith.maximumf %27, %28 : vector<8x128xf32>
    %30 = arith.truncf %29 : vector<8x128xf32> to vector<8x128xbf16>
    %31 = vector.extract_strided_slice %30 {offsets = [0, 0], sizes = [8, 32], strides = [1, 1]} : vector<8x128xbf16> to vector<8x32xbf16>
    %c3 = arith.constant 3 : index
    %c0_19 = arith.constant 0 : index
    %c0_20 = arith.constant 0 : index
    %32 = vector.load %arg2[%c3, %c0_19, %c0_20] : memref<4x128x128xbf16, #tpu.memory_space<vmem>>, vector<1x32x128xbf16>
    %33 = vector.shape_cast %32 : vector<1x32x128xbf16> to vector<32x128xbf16>
    %cst_21 = arith.constant dense<0.000000e+00> : vector<8x128xf32>
    %34 = tpu.matmul %31, %33, %cst_21 {dimension_numbers = #tpu.dot_dimension_numbers<[1], [0], [0], [1], [0, 0, 1, 1], [], []>} : vector<8x32xbf16>, vector<32x128xbf16>, vector<8x128xf32> -> vector<8x128xf32>
    %c3_22 = arith.constant 3 : index
    %c0_23 = arith.constant 0 : index
    %35 = vector.load %arg3[%c3_22, %c0_23] : memref<4x128xf32, #tpu.memory_space<vmem>>, vector<1x128xf32>
    %36 = vector.broadcast %35 : vector<1x128xf32> to vector<8x128xf32>
    %37 = arith.addf %34, %36 : vector<8x128xf32>
    %38 = math.tanh %37 : vector<8x128xf32>
    %c0_24 = arith.constant 0 : index
    %c0_25 = arith.constant 0 : index
    %39 = vector.load %arg4[%c0_24, %c0_25] : memref<8x128xf32, #tpu.memory_space<vmem>>, vector<8x128xf32>
    tpu.vector_store %arg4[%c0_24, %c0_25], %38 {strides = array<i32>} : memref<8x128xf32, #tpu.memory_space<vmem>>, vector<8x128xf32>,
    return
  }
  func.func @transform_0(%arg0: i32) -> (i32, i32) {
    %c0_i32 = arith.constant 0 : i32
    %c0_i32_0 = arith.constant 0 : i32
    return %arg0, %c0_i32 : i32, i32
  }
  func.func @transform_1(%arg0: i32) -> (i32, i32, i32) {
    %c0_i32 = arith.constant 0 : i32
    %c0_i32_0 = arith.constant 0 : i32
    %c0_i32_1 = arith.constant 0 : i32
    %c0_i32_2 = arith.constant 0 : i32
    return %c0_i32, %c0_i32_0, %c0_i32_1 : i32, i32, i32
  }
  func.func @transform_2(%arg0: i32) -> (i32, i32) {
    %c0_i32 = arith.constant 0 : i32
    %c0_i32_0 = arith.constant 0 : i32
    %c0_i32_1 = arith.constant 0 : i32
    return %c0_i32, %c0_i32_0 : i32, i32
  }
  func.func @transform_3(%arg0: i32) -> (i32, i32) {
    %c0_i32 = arith.constant 0 : i32
    %c0_i32_0 = arith.constant 0 : i32
    return %arg0, %c0_i32 : i32, i32
  }
}

</mosaic_0001>

<llo_original>
// kernel: actor_forward.1
$region0: #{actor_forward.1}
  #allocation0 [shape = 'u32[]', space=smem, size = 0x4, offset = 0x4, fixed_abs, tag = 'smem constant byte address 0x4 - core index']
  #allocation1 [shape = 'u32[144,128]{1,0:T(1,128)}', space=vmem, size = 0x12000, scoped, tag = 'internal scratch']
  %s0 = inlined_call_operand.hbm [shape: f32[8,16], index: 0, kind: input, shape index: {}]
  %s1 = inlined_call_operand.hbm [shape: bf16[4,128,128], index: 1, kind: input, shape index: {}]
  %s2 = inlined_call_operand.hbm [shape: f32[4,128], index: 2, kind: input, shape index: {}]
  %s3 = inlined_call_operand.hbm [shape: f32[8,128], index: 3, kind: output, shape index: {}]
  %s4 = sld [smem:[#allocation0]]
  $region34: #{actor_forward.1} parent=0
    _
  %s6 = ssub.s32 1, %s4
  %s7 = scalar_select 0, %s6, %s4
  $region1: #{actor_forward.1} parent=0
    #allocation2 [shape = 'u8[4096]{0}', space=vmem, size = 0x1000, scoped, tag = 'input window, operand 0, single buffered']
    #allocation3 [shape = 's32[1]{0}', space=sflag, size = 0x4, scoped, tag = 'scoped memory for actor_forward.1']
    #allocation4 [shape = 's32[1]{0}', space=sflag, size = 0x4, scoped, tag = 'scoped memory for actor_forward.1']
    #allocation5 [shape = 'u8[131072]{0}', space=vmem, size = 0x20000, scoped, tag = 'input window, operand 1, single buffered']
    #allocation6 [shape = 's32[1]{0}', space=sflag, size = 0x4, scoped, tag = 'scoped memory for actor_forward.1']
    #allocation7 [shape = 'u8[2048]{0}', space=vmem, size = 0x800, scoped, tag = 'input window, operand 2, single buffered']
    #allocation8 [shape = 'u8[4096]{0}', space=vmem, size = 0x1000, scoped, tag = 'output window, operand 0, single buffered']
    %8 = vsyncpa [#allocation3], 0
    %9 = vsyncpa [#allocation6], 0
    %10 = vsyncpa [#allocation4], 0
    // Predicated region
    $region2: #{actor_forward.1} parent=1 // pred_check
      _
    $region3: #{actor_forward.1} parent=1 // pred_check_branch
      %12 = sbr.rel (0) target = $region5
    $region4: #{actor_forward.1} parent=1 // pred_region
      %s14 = ssub.s32 128, 128
      %15 = vsyncadd [#allocation3], %s14
      %s17 = sshll.u32 [#allocation2], 4
      %s18 = int_to_ptr.vmem [resolvable:$true] %s17
      %20 = dma.hbm_to_vmem [thread:$0]  %s0, 128, %s18, [#allocation3]
    $region5: #{actor_forward.1} parent=1 // pred_fallthru
      _
    // Predicated region
    $region6: #{actor_forward.1} parent=1 // pred_check
      _
    $region7: #{actor_forward.1} parent=1 // pred_check_branch
      %22 = sbr.rel (0) target = $region9
    $region8: #{actor_forward.1} parent=1 // pred_region
      %s24 = ssub.s32 4096, 4096
      %25 = vsyncadd [#allocation6], %s24
      %s26 = sshll.u32 [#allocation5], 4
      %s27 = int_to_ptr.vmem [resolvable:$true] %s26
      %32 = dma.hbm_to_vmem [thread:$0]  %s1, 4096, %s27, [#allocation6], 64, 64, 4
    $region9: #{actor_forward.1} parent=1 // pred_fallthru
      _
    // Predicated region
    $region10: #{actor_forward.1} parent=1 // pred_check
      _
    $region11: #{actor_forward.1} parent=1 // pred_check_branch
      %34 = sbr.rel (0) target = $region13
    $region12: #{actor_forward.1} parent=1 // pred_region
      %s36 = ssub.s32 64, 64
      %37 = vsyncadd [#allocation6], %s36
      %s39 = sshll.u32 [#allocation7], 4
      %s40 = int_to_ptr.vmem [resolvable:$true] %s39
      %42 = dma.hbm_to_vmem [thread:$0]  %s2, 64, %s40, [#allocation6]
    $region13: #{actor_forward.1} parent=1 // pred_fallthru
      _
    // Predicated region
    $region14: #{actor_forward.1} parent=1 // pred_check
      _
    $region15: #{actor_forward.1} parent=1 // pred_check_branch
      %44 = sbr.rel (0) target = $region17
    $region16: #{actor_forward.1} parent=1 // pred_region
      %45 = dma.done [#allocation3], 128
    $region17: #{actor_forward.1} parent=1 // pred_fallthru
      _
    // Predicated region
    $region18: #{actor_forward.1} parent=1 // pred_check
      _
    $region19: #{actor_forward.1} parent=1 // pred_check_branch
      %47 = sbr.rel (0) target = $region21
    $region20: #{actor_forward.1} parent=1 // pred_region
      %48 = dma.done [#allocation6], 4096
    $region21: #{actor_forward.1} parent=1 // pred_fallthru
      _
    // Predicated region
    $region22: #{actor_forward.1} parent=1 // pred_check
      _
    $region23: #{actor_forward.1} parent=1 // pred_check_branch
      %50 = sbr.rel (0) target = $region25
    $region24: #{actor_forward.1} parent=1 // pred_region
      %51 = dma.done [#allocation6], 64
    $region25: #{actor_forward.1} parent=1 // pred_fallthru
      _
    %v53 = vld [vmem:[#allocation2] sm:$0xff]
    %v54 = vpack.c.bf16 %v53, %v53
    %v55 = vld [vmem:[#allocation5] sm:$0xf]
    %v56 = vld [vmem:[#allocation5 + $0x4] sm:$0xf]
    %v57 = vld [vmem:[#allocation7] sm:$0x1]
    %v58 = vlaneseq
    %v59 = vshrl.u32 %v58, 7
    %v60 = vsub.s32 0, %v59
    %v61 = vrot.slane %v57, %v60
    %v64 = vunpack.c.l.b16 %v55
    %v65 = vunpack.c.l.b16 %v56
    %v66 = vpack.c.b16 %v65, %v64
    %vm68 = vcmask 130048
    %v70 = vsel %vm68, %v54, 0
    %72 = vmatprep.subr.bf16.mxu0 0
    %73 = vmatpush1.bf16.msra.mxu0 0
    %74 = vmatprep.subr.bf16.mxu0 0
    %75 = vmatpush1.bf16.msra.mxu0 0
    %76 = vmatprep.subr.bf16.mxu0 0
    %77 = vmatpush1.bf16.msra.mxu0 0
    %78 = vmatprep.subr.bf16.mxu0 0
    %79 = vmatpush1.bf16.msra.mxu0 0
    %80 = vmatprep.subr.bf16.mxu0 0
    %81 = vmatpush1.bf16.msra.mxu0 0
    %82 = vmatprep.subr.bf16.mxu0 0
    %83 = vmatpush1.bf16.msra.mxu0 0
    %84 = vmatprep.subr.bf16.mxu0 0
    %85 = vmatpush1.bf16.msra.mxu0 0
    %86 = vmatprep.subr.bf16.mxu0 0
    %87 = vmatpush1.bf16.msra.mxu0 %v66
    %88 = vmatprep.subr.bf16.mxu0 0
    %89 = vmatpush2.bf16.msra.mxu0 0
    %90 = vmatprep.subr.bf16.mxu0 0
    %91 = vmatpush2.bf16.msra.mxu0 0
    %92 = vmatprep.subr.bf16.mxu0 0
    %93 = vmatpush2.bf16.msra.mxu0 0
    %94 = vmatprep.subr.bf16.mxu0 0
    %95 = vmatpush2.bf16.msra.mxu0 0
    %96 = vmatprep.subr.bf16.mxu0 0
    %97 = vmatpush2.bf16.msra.mxu0 0
    %98 = vmatprep.subr.bf16.mxu0 0
    %99 = vmatpush2.bf16.msra.mxu0 0
    %100 = vmatprep.subr.bf16.mxu0 0
    %101 = vmatpush2.bf16.msra.mxu0 0
    %102 = vmatprep.subr.bf16.mxu0 0
    %103 = vmatpush2.bf16.msra.mxu0 0
    %104 = vmatprep.mubr.bf16.mxu0 0
    %105 = vmatmul.mubr.bf16.gmra.mxu0 %v70
    %v106 = vpop.f32.mrf.mxu0
    %v107 = vadd.f32 %v61, %v106
    %v108 = vpop.f32.mrf.mxu0
    %v109 = vpop.f32.mrf.mxu0
    %v110 = vpop.f32.mrf.mxu0
    %111 = vdwg.mxu0
    %v112 = vmax.f32 %v107, 0.0
    %v113 = vpack.c.bf16 %v112, %v112
    %s114 = scalar_lea.vmem [#allocation5], 64
    %v115 = vld [vmem:[%s114] sm:$0xf]
    %v116 = vld [vmem:[%s114 + $0x4] sm:$0xf]
    %v117 = vld [vmem:[%s114 + $0x8] sm:$0xf]
    %v118 = vld [vmem:[%s114 + $0xc] sm:$0xf]
    %v119 = vld [vmem:[#allocation7 + $0x1] sm:$0x1]
    %v120 = vlaneseq
    %v121 = vshrl.u32 %v120, 7
    %v122 = vsub.s32 0, %v121
    %v123 = vrot.slane %v119, %v122
    %v128 = vunpack.c.l.b16 %v115
    %v129 = vunpack.c.l.b16 %v116
    %v130 = vunpack.c.l.b16 %v117
    %v131 = vunpack.c.l.b16 %v118
    %v132 = vpack.c.b16 %v129, %v128
    %v133 = vpack.c.b16 %v131, %v130
    %vm136 = vcmask 261120
    %v138 = vsel %vm136, %v113, 0
    %140 = vmatprep.subr.bf16.mxu0 0
    %141 = vmatpush1.bf16.msra.mxu0 0
    %142 = vmatprep.subr.bf16.mxu0 0
    %143 = vmatpush1.bf16.msra.mxu0 0
    %144 = vmatprep.subr.bf16.mxu0 0
    %145 = vmatpush1.bf16.msra.mxu0 0
    %146 = vmatprep.subr.bf16.mxu0 0
    %147 = vmatpush1.bf16.msra.mxu0 0
    %148 = vmatprep.subr.bf16.mxu0 0
    %149 = vmatpush1.bf16.msra.mxu0 0
    %150 = vmatprep.subr.bf16.mxu0 0
    %151 = vmatpush1.bf16.msra.mxu0 0
    %152 = vmatprep.subr.bf16.mxu0 0
    %153 = vmatpush1.bf16.msra.mxu0 %v133
    %154 = vmatprep.subr.bf16.mxu0 0
    %155 = vmatpush1.bf16.msra.mxu0 %v132
    %156 = vmatprep.subr.bf16.mxu0 0
    %157 = vmatpush2.bf16.msra.mxu0 0
    %158 = vmatprep.subr.bf16.mxu0 0
    %159 = vmatpush2.bf16.msra.mxu0 0
    %160 = vmatprep.subr.bf16.mxu0 0
    %161 = vmatpush2.bf16.msra.mxu0 0
    %162 = vmatprep.subr.bf16.mxu0 0
    %163 = vmatpush2.bf16.msra.mxu0 0
    %164 = vmatprep.subr.bf16.mxu0 0
    %165 = vmatpush2.bf16.msra.mxu0 0
    %166 = vmatprep.subr.bf16.mxu0 0
    %167 = vmatpush2.bf16.msra.mxu0 0
    %168 = vmatprep.subr.bf16.mxu0 0
    %169 = vmatpush2.bf16.msra.mxu0 0
    %170 = vmatprep.subr.bf16.mxu0 0
    %171 = vmatpush2.bf16.msra.mxu0 0
    %172 = vmatprep.mubr.bf16.mxu0 0
    %173 = vmatmul.mubr.bf16.gmra.mxu0 %v138
    %v174 = vpop.f32.mrf.mxu0
    %v175 = vadd.f32 %v123, %v174
    %v176 = vpop.f32.mrf.mxu0
    %v177 = vpop.f32.mrf.mxu0
    %v178 = vpop.f32.mrf.mxu0
    %179 = vdwg.mxu0
    %v180 = vmax.f32 %v175, 0.0
    %v181 = vpack.c.bf16 %v180, %v180
    %s182 = scalar_lea.vmem [#allocation5], 128
    %v183 = vld [vmem:[%s182] sm:$0xf]
    %v184 = vld [vmem:[%s182 + $0x4] sm:$0xf]
    %v185 = vld [vmem:[%s182 + $0x8] sm:$0xf]
    %v186 = vld [vmem:[%s182 + $0xc] sm:$0xf]
    %v187 = vld [vmem:[%s182 + $0x10] sm:$0xf]
    %v188 = vld [vmem:[%s182 + $0x14] sm:$0xf]
    %v189 = vld [vmem:[%s182 + $0x18] sm:$0xf]
    %v190 = vld [vmem:[%s182 + $0x1c] sm:$0xf]
    %v191 = vld [vmem:[#allocation7 + $0x2] sm:$0x1]
    %v192 = vlaneseq
    %v193 = vshrl.u32 %v192, 7
    %v194 = vsub.s32 0, %v193
    %v195 = vrot.slane %v191, %v194
    %v204 = vunpack.c.l.b16 %v183
    %v205 = vunpack.c.l.b16 %v184
    %v206 = vunpack.c.l.b16 %v185
    %v207 = vunpack.c.l.b16 %v186
    %v208 = vunpack.c.l.b16 %v187
    %v209 = vunpack.c.l.b16 %v188
    %v210 = vunpack.c.l.b16 %v189
    %v211 = vunpack.c.l.b16 %v190
    %v212 = vpack.c.b16 %v205, %v204
    %v213 = vpack.c.b16 %v207, %v206
    %v214 = vpack.c.b16 %v209, %v208
    %v215 = vpack.c.b16 %v211, %v210
    %vm220 = vcmask 523264
    %v222 = vsel %vm220, %v181, 0
    %224 = vmatprep.subr.bf16.mxu0 0
    %225 = vmatpush1.bf16.msra.mxu0 0
    %226 = vmatprep.subr.bf16.mxu0 0
    %227 = vmatpush1.bf16.msra.mxu0 0
    %228 = vmatprep.subr.bf16.mxu0 0
    %229 = vmatpush1.bf16.msra.mxu0 0
    %230 = vmatprep.subr.bf16.mxu0 0
    %231 = vmatpush1.bf16.msra.mxu0 0
    %232 = vmatprep.subr.bf16.mxu0 0
    %233 = vmatpush1.bf16.msra.mxu0 %v215
    %234 = vmatprep.subr.bf16.mxu0 0
    %235 = vmatpush1.bf16.msra.mxu0 %v214
    %236 = vmatprep.subr.bf16.mxu0 0
    %237 = vmatpush1.bf16.msra.mxu0 %v213
    %238 = vmatprep.subr.bf16.mxu0 0
    %239 = vmatpush1.bf16.msra.mxu0 %v212
    %240 = vmatprep.subr.bf16.mxu0 0
    %241 = vmatpush2.bf16.msra.mxu0 0
    %242 = vmatprep.subr.bf16.mxu0 0
    %243 = vmatpush2.bf16.msra.mxu0 0
    %244 = vmatprep.subr.bf16.mxu0 0
    %245 = vmatpush2.bf16.msra.mxu0 0
    %246 = vmatprep.subr.bf16.mxu0 0
    %247 = vmatpush2.bf16.msra.mxu0 0
    %248 = vmatprep.subr.bf16.mxu0 0
    %249 = vmatpush2.bf16.msra.mxu0 0
    %250 = vmatprep.subr.bf16.mxu0 0
    %251 = vmatpush2.bf16.msra.mxu0 0
    %252 = vmatprep.subr.bf16.mxu0 0
    %253 = vmatpush2.bf16.msra.mxu0 0
    %254 = vmatprep.subr.bf16.mxu0 0
    %255 = vmatpush2.bf16.msra.mxu0 0
    %256 = vmatprep.mubr.bf16.mxu0 0
    %257 = vmatmul.mubr.bf16.gmra.mxu0 %v222
    %v258 = vpop.f32.mrf.mxu0
    %v259 = vadd.f32 %v195, %v258
    %v260 = vpop.f32.mrf.mxu0
    %v261 = vpop.f32.mrf.mxu0
    %v262 = vpop.f32.mrf.mxu0
    %263 = vdwg.mxu0
    %v264 = vmax.f32 %v259, 0.0
    %v265 = vpack.c.bf16 %v264, %v264
    %s266 = scalar_lea.vmem [#allocation5], 192
    %v267 = vld [vmem:[%s266] sm:$0xf]
    %v268 = vld [vmem:[%s266 + $0x4] sm:$0xf]
    %v269 = vld [vmem:[%s266 + $0x8] sm:$0xf]
    %v270 = vld [vmem:[%s266 + $0xc] sm:$0xf]
    %v271 = vld [vmem:[#allocation7 + $0x3] sm:$0x1]
    %v272 = vlaneseq
    %v273 = vshrl.u32 %v272, 7
    %v274 = vsub.s32 0, %v273
    %v275 = vrot.slane %v271, %v274
    %v280 = vunpack.c.l.b16 %v267
    %v281 = vunpack.c.l.b16 %v268
    %v282 = vunpack.c.l.b16 %v269
    %v283 = vunpack.c.l.b16 %v270
    %v284 = vpack.c.b16 %v281, %v280
    %v285 = vpack.c.b16 %v283, %v282
    %v289 = vsel %vm136, %v265, 0
    %291 = vmatprep.subr.bf16.mxu0 0
    %292 = vmatpush1.bf16.msra.mxu0 0
    %293 = vmatprep.subr.bf16.mxu0 0
    %294 = vmatpush1.bf16.msra.mxu0 0
    %295 = vmatprep.subr.bf16.mxu0 0
    %296 = vmatpush1.bf16.msra.mxu0 0
    %297 = vmatprep.subr.bf16.mxu0 0
    %298 = vmatpush1.bf16.msra.mxu0 0
    %299 = vmatprep.subr.bf16.mxu0 0
    %300 = vmatpush1.bf16.msra.mxu0 0
    %301 = vmatprep.subr.bf16.mxu0 0
    %302 = vmatpush1.bf16.msra.mxu0 0
    %303 = vmatprep.subr.bf16.mxu0 0
    %304 = vmatpush1.bf16.msra.mxu0 %v285
    %305 = vmatprep.subr.bf16.mxu0 0
    %306 = vmatpush1.bf16.msra.mxu0 %v284
    %307 = vmatprep.subr.bf16.mxu0 0
    %308 = vmatpush2.bf16.msra.mxu0 0
    %309 = vmatprep.subr.bf16.mxu0 0
    %310 = vmatpush2.bf16.msra.mxu0 0
    %311 = vmatprep.subr.bf16.mxu0 0
    %312 = vmatpush2.bf16.msra.mxu0 0
    %313 = vmatprep.subr.bf16.mxu0 0
    %314 = vmatpush2.bf16.msra.mxu0 0
    %315 = vmatprep.subr.bf16.mxu0 0
    %316 = vmatpush2.bf16.msra.mxu0 0
    %317 = vmatprep.subr.bf16.mxu0 0
    %318 = vmatpush2.bf16.msra.mxu0 0
    %319 = vmatprep.subr.bf16.mxu0 0
    %320 = vmatpush2.bf16.msra.mxu0 0
    %321 = vmatprep.subr.bf16.mxu0 0
    %322 = vmatpush2.bf16.msra.mxu0 0
    %323 = vmatprep.mubr.bf16.mxu0 0
    %324 = vmatmul.mubr.bf16.gmra.mxu0 %v289
    %v325 = vpop.f32.mrf.mxu0
    %v326 = vadd.f32 %v275, %v325
    %v327 = vpop.f32.mrf.mxu0
    %v328 = vpop.f32.mrf.mxu0
    %v329 = vpop.f32.mrf.mxu0
    %330 = vdwg.mxu0
    %v331 = vtanh.pop %v326
    %332 = vst [vmem:[#allocation8] sm:$0xff] %v331
    // Predicated region
    $region26: #{actor_forward.1} parent=1 // pred_check
      _
    $region27: #{actor_forward.1} parent=1 // pred_check_branch
      %334 = sbr.rel (0) target = $region29
    $region28: #{actor_forward.1} parent=1 // pred_region
      %s336 = ssub.s32 128, 128
      %337 = vsyncadd [#allocation4], %s336
      %s339 = sshll.u32 [#allocation8], 4
      %s340 = int_to_ptr.vmem [resolvable:$true] %s339
      %342 = dma.vmem_to_hbm [thread:$0]  %s340, 128, %s3, [#allocation4]
    $region29: #{actor_forward.1} parent=1 // pred_fallthru
      _
    // Predicated region
    $region30: #{actor_forward.1} parent=1 // pred_check
      _
    $region31: #{actor_forward.1} parent=1 // pred_check_branch
      %344 = sbr.rel (0) target = $region33
    $region32: #{actor_forward.1} parent=1 // pred_region
      %345 = dma.done [#allocation4], 128
    $region33: #{actor_forward.1} parent=1 // pred_fallthru
      _
    %346 = vsyncpa [#allocation3], 1
    %347 = vsyncpa [#allocation6], 1
    %348 = vsyncpa [#allocation4], 1

</llo_original>
